<compile_context>
chip_gen: v6e
topology: v6e:2x2x1
jax: 0.10.0
libtpu: 0.0.40
codegen_flags: <defaults>
</compile_context>

<pallas_src>
import jax
import jax.numpy as jnp
from jax import lax
from jax.experimental import pallas as pl
from jax.experimental.pallas import tpu as pltpu


def _even_goes_in_low_bits():
    """Probe XLA's u32 -> 2 x bf16 bitcast element order (runs once at import,
    on the default (TPU) backend)."""
    probe = jax.lax.bitcast_convert_type(jnp.uint32(0x3F800000), jnp.bfloat16)
    # 0x3F80 (bf16 1.0) sits in the HIGH 16 bits of the u32; if index 1 sees it,
    # index 0 maps to the LOW 16 bits, so 'even' (output column 2m) must be
    # packed into the low half.
    return bool(probe[1] == 1.0)


_EVEN_IN_LOW = _even_goes_in_low_bits()


def upsample1d_kernel(x_ref, halo_ref, w_ref, b_ref, o_ref):
    # x_ref    : (1, C, Lt)   input tile (stored dtype, cast to bf16 in-kernel)
    # halo_ref : (1, 1, C, 2) pre-computed halo taps (f32), zero at true edges:
    #              [:, 0] = tap3 applied to x[:, tile_start - 1]
    #              [:, 1] = tap0 applied to x[:, tile_end]
    # w_ref    : (4C, C)      fused weight, row k*C+co = W[:, co, k]  (bf16)
    # b_ref    : (C, 1)       bias (f32)
    # o_ref    : (1, C, Lt)   uint32: each lane packs (bf16 even, bf16 odd)
    w = w_ref[...]                                        # (4C, C)
    x = x_ref[0, :, :].astype(jnp.bfloat16)               # VPU cast next to MXU
    c = w.shape[1]
    lt = x.shape[1]

    # One fused MXU matmul for all four transposed-conv taps:
    #   y[k*C + co, m] = sum_ci W[ci, co, k] * x[ci, m]
    y = jnp.dot(w, x, preferred_element_type=jnp.float32)  # (4C, Lt) f32
    y0 = y[0 * c:1 * c, :]
    y1 = y[1 * c:2 * c, :]
    y2 = y[2 * c:3 * c, :]
    y3 = y[3 * c:4 * c, :]

    halo = halo_ref[0, 0, :, :]                            # (C, 2) f32
    y3_left = halo[:, 0:1]                                 # tap3 of left halo col
    y0_right = halo[:, 1:2]                                # tap0 of right halo col

    # +/-1 column shifts via XLU rolls; the wrapped-around boundary column is
    # replaced by the halo taps (already zero at the true array boundaries).
    lane = lax.broadcasted_iota(jnp.int32, (c, lt), 1)
    y3_shift = jnp.where(lane == 0, y3_left,
                         pltpu.roll(y3, shift=1, axis=1))        # y3[:, m-1]
    y0_shift = jnp.where(lane == lt - 1, y0_right,
                         pltpu.roll(y0, shift=lt - 1, axis=1))   # y0[:, m+1]

    bias = b_ref[...]                                      # (C, 1)
    even = y1 + y3_shift + bias                            # out[:, 2m]
    odd = y2 + y0_shift + bias                             # out[:, 2m+1]

    # Interleave by packing two bf16 values into one u32 lane.  f32(bf16(v))
    # keeps the bf16 bits in the upper half of the 32-bit word, so only 32-bit
    # bitcasts / shifts are needed (no 16-bit integer ops).
    eb = pltpu.bitcast(even.astype(jnp.bfloat16).astype(jnp.float32), jnp.uint32)
    ob = pltpu.bitcast(odd.astype(jnp.bfloat16).astype(jnp.float32), jnp.uint32)
    if _EVEN_IN_LOW:
        packed = (eb >> 16) | ob        # even -> low 16 bits, odd -> high 16 bits
    else:
        packed = eb | (ob >> 16)        # even -> high 16 bits, odd -> low 16 bits
    o_ref[0, :, :] = packed


def _tile_vmem_bytes(C, lt):
    """Approximate pipelined VMEM footprint for one (batch, L-tile) grid step."""
    return (2 * C * lt * 4        # f32 input tile, double-buffered
            + 2 * C * lt * 4      # packed u32 output tile, double-buffered
            + 4 * C * C * 2       # bf16 fused weight, single-buffered
            + 10 * C * lt * 4)    # in-kernel temporaries (y, shifts, even/odd)


def _pick_lt(L, C):
    budget = 40 << 20             # v7x-safe (64 MiB VMEM per TensorCore)
    for cand in (1024, 512, 256, 128):
        if L % cand == 0 and _tile_vmem_bytes(C, cand) <= budget:
            return cand
    return L                      # full-extent block (legal; padded if L%128!=0)


def upsample1d(x, w, b, *, lt=None):
    """ConvTranspose1d(C, C, kernel_size=4, stride=2, padding=1).

    x: (B, C, L), w: (C, C, 4) (PyTorch (in, out, k) layout), b: (C,).
    Returns (B, C, 2*L) in bfloat16.
    """
    B, C, L = x.shape
    assert w.shape == (C, C, 4) and b.shape == (C,)

    if lt is None:
        lt = _pick_lt(L, C)
    assert L % lt == 0
    T = L // lt

    # Fused lane-dense weight: (Cin, Cout, K) -> (K, Cout, Cin) -> (4C, C).
    w_mat = jnp.transpose(w, (2, 1, 0)).reshape(4 * C, C).astype(jnp.bfloat16)
    b2 = b.reshape(C, 1).astype(jnp.float32)

    # Pre-gathered halo taps (tiny: 2 columns per tile), zero at true edges.
    xt = x.reshape(B, C, T, lt)
    zero = jnp.zeros((B, C, 1), x.dtype)
    left_cols = jnp.concatenate([zero, xt[:, :, :T - 1, lt - 1]], axis=2)  # (B,C,T)
    right_cols = jnp.concatenate([xt[:, :, 1:, 0], zero], axis=2)          # (B,C,T)
    y3_left = jnp.einsum('bct,co->bto', left_cols, w[:, :, 3])
    y0_right = jnp.einsum('bct,co->bto', right_cols, w[:, :, 0])
    halo_taps = jnp.stack([y3_left, y0_right], axis=-1).astype(jnp.float32)  # (B,T,C,2)

    need = _tile_vmem_bytes(C, lt)
    try:
        vmem_cap = pltpu.get_tpu_info().vmem_capacity_bytes
    except Exception:
        vmem_cap = 64 << 20       # v7x per-TensorCore floor
    vmem_limit = int(min(max(need + (8 << 20), 32 << 20), int(vmem_cap * 0.75)))

    def call(use_pipeline_mode):
        const_kw = {"pipeline_mode": pl.Buffered(1)} if use_pipeline_mode else {}
        grid_spec = pltpu.PrefetchScalarGridSpec(
            num_scalar_prefetch=0,
            grid=(B, T),
            in_specs=[
                pl.BlockSpec((1, C, lt), lambda i, t: (i, 0, t)),
                pl.BlockSpec((1, 1, C, 2), lambda i, t: (i, t, 0, 0)),
                pl.BlockSpec((4 * C, C), lambda i, t: (0, 0), **const_kw),
                pl.BlockSpec((C, 1), lambda i, t: (0, 0), **const_kw),
            ],
            out_specs=pl.BlockSpec((1, C, lt), lambda i, t: (i, 0, t)),
        )
        return pl.pallas_call(
            upsample1d_kernel,
            out_shape=jax.ShapeDtypeStruct((B, C, L), jnp.uint32),
            grid_spec=grid_spec,
            compiler_params=pltpu.CompilerParams(
                dimension_semantics=("parallel", "parallel"),
                vmem_limit_bytes=vmem_limit,
            ),
        )(x, halo_taps, w_mat, b2)

    try:
        packed = call(True)
    except Exception:
        # pipeline_mode=pl.Buffered(1) unavailable on this JAX version; fall
        # back to default double-buffering for the constant weight/bias.
        packed = call(False)

    # Reinterpret each u32 lane as (bf16 even, bf16 odd): a free bitcast +
    # minor-dim reshape replaces the old full-pass transpose epilogue.
    out = jax.lax.bitcast_convert_type(packed, jnp.bfloat16)   # (B, C, L, 2)
    return out.reshape(B, C, 2 * L)


def upsample1d_reference(x, w, b):
    """Direct ConvTranspose1d(k=4, s=2, p=1) reference (PyTorch semantics)."""
    B, C, L = x.shape
    out = jnp.zeros((B, C, 2 * L), jnp.float32)
    taps = [jnp.einsum('bil,io->bol', x, w[:, :, k]) for k in range(4)]
    # tap k of input column li lands at output column 2*li - 1 + k
    out = out.at[:, :, 1:2 * L - 2:2].add(taps[0][:, :, 1:])   # k=0, li >= 1
    out = out.at[:, :, 0::2].add(taps[1])                      # k=1
    out = out.at[:, :, 1::2].add(taps[2])                      # k=2
    out = out.at[:, :, 2::2].add(taps[3][:, :, :L - 1])        # k=3, li <= L-2
    return out + b[None, :, None]


if __name__ == "__main__":
    key = jax.random.PRNGKey(0)
    kx, kw, kb, kx2 = jax.random.split(key, 4)

    # Small case: single L tile (T=1), grid (2, 1).
    B, C, L = 2, 16, 128
    x = jax.random.normal(kx, (B, C, L), dtype=jnp.float32)
    # ConvTranspose1d weight shape: (in_channels, out_channels, kernel_size)
    w = jax.random.normal(kw, (C, C, 4), dtype=jnp.float32) * 0.1
    b = jax.random.normal(kb, (C,), dtype=jnp.float32) * 0.1

    y = jax.block_until_ready(upsample1d(x, w, b))
    y_ref = upsample1d_reference(x, w, b)
    assert y.shape == (B, C, 2 * L), y.shape
    assert jnp.allclose(y.astype(jnp.float32), y_ref, atol=3e-2, rtol=3e-2), \
        float(jnp.max(jnp.abs(y.astype(jnp.float32) - y_ref)))

    # Larger case exercising the L-tiled path (T=2) with cross-tile halos.
    B2, L2, LT2 = 1, 256, 128
    x2 = jax.random.normal(kx2, (B2, C, L2), dtype=jnp.float32)
    y2 = jax.block_until_ready(upsample1d(x2, w, b, lt=LT2))
    y2_ref = upsample1d_reference(x2, w, b)
    assert y2.shape == (B2, C, 2 * L2), y2.shape
    assert jnp.allclose(y2.astype(jnp.float32), y2_ref, atol=3e-2, rtol=3e-2), \
        float(jnp.max(jnp.abs(y2.astype(jnp.float32) - y2_ref)))

    print("KERNEL_OK")
</pallas_src>

<mosaic_0001>
module attributes {stable_mosaic.version = 11 : i64} {
  func.func @upsample1d_kernel(%arg0: i32, %arg1: i32, %arg2: memref<1x16x128xf32, #tpu.memory_space<vmem>>, %arg3: memref<1x1x16x2xf32, #tpu.memory_space<vmem>>, %arg4: memref<64x16xbf16, #tpu.memory_space<vmem>>, %arg5: memref<16x1xf32, #tpu.memory_space<vmem>>, %arg6: memref<1x16x128xi32, #tpu.memory_space<vmem>>) attributes {dimension_semantics = [#tpu.dimension_semantics<parallel>, #tpu.dimension_semantics<parallel>], iteration_bounds = array<i64: 2, 1>, scalar_prefetch = 0 : i64, scratch_operands = 0 : i64, tpu.core_type = #tpu.core_type<tc>, window_params = [{transform_indices = @transform_0, window_bounds = array<i64: 1, 16, 128>}, {transform_indices = @transform_1, window_bounds = array<i64: 1, 1, 16, 2>}, {pipeline_mode = #tpu.pipeline_mode<synchronous>, transform_indices = @transform_2, window_bounds = array<i64: 64, 16>}, {pipeline_mode = #tpu.pipeline_mode<synchronous>, transform_indices = @transform_3, window_bounds = array<i64: 16, 1>}, {transform_indices = @transform_4, window_bounds = array<i64: 1, 16, 128>}]} {
    %c0 = arith.constant 0 : index
    %c0_0 = arith.constant 0 : index
    %0 = vector.load %arg4[%c0, %c0_0] : memref<64x16xbf16, #tpu.memory_space<vmem>>, vector<64x16xbf16>
    %c0_1 = arith.constant 0 : index
    %c0_2 = arith.constant 0 : index
    %c0_3 = arith.constant 0 : index
    %1 = vector.load %arg2[%c0_1, %c0_2, %c0_3] : memref<1x16x128xf32, #tpu.memory_space<vmem>>, vector<1x16x128xf32>
    %2 = vector.shape_cast %1 : vector<1x16x128xf32> to vector<16x128xf32>
    %3 = arith.truncf %2 : vector<16x128xf32> to vector<16x128xbf16>
    %cst = arith.constant dense<0.000000e+00> : vector<64x128xf32>
    %4 = tpu.matmul %0, %3, %cst {dimension_numbers = #tpu.dot_dimension_numbers<[1], [0], [0], [1], [0, 0, 1, 1], [], []>} : vector<64x16xbf16>, vector<16x128xbf16>, vector<64x128xf32> -> vector<64x128xf32>
    %5 = vector.extract_strided_slice %4 {offsets = [0, 0], sizes = [16, 128], strides = [1, 1]} : vector<64x128xf32> to vector<16x128xf32>
    %6 = vector.extract_strided_slice %4 {offsets = [16, 0], sizes = [16, 128], strides = [1, 1]} : vector<64x128xf32> to vector<16x128xf32>
    %7 = vector.extract_strided_slice %4 {offsets = [32, 0], sizes = [16, 128], strides = [1, 1]} : vector<64x128xf32> to vector<16x128xf32>
    %8 = vector.extract_strided_slice %4 {offsets = [48, 0], sizes = [16, 128], strides = [1, 1]} : vector<64x128xf32> to vector<16x128xf32>
    %c0_4 = arith.constant 0 : index
    %c0_5 = arith.constant 0 : index
    %c0_6 = arith.constant 0 : index
    %c0_7 = arith.constant 0 : index
    %9 = vector.load %arg3[%c0_4, %c0_5, %c0_6, %c0_7] : memref<1x1x16x2xf32, #tpu.memory_space<vmem>>, vector<1x1x16x2xf32>
    %10 = vector.shape_cast %9 : vector<1x1x16x2xf32> to vector<16x2xf32>
    %11 = vector.extract_strided_slice %10 {offsets = [0, 0], sizes = [16, 1], strides = [1, 1]} : vector<16x2xf32> to vector<16x1xf32>
    %12 = vector.extract_strided_slice %10 {offsets = [0, 1], sizes = [16, 1], strides = [1, 1]} : vector<16x2xf32> to vector<16x1xf32>
    %13 = tpu.iota {dimensions = array<i32: 1>} : vector<16x128xi32>
    %c0_i32 = arith.constant 0 : i32
    %14 = vector.broadcast %c0_i32 : i32 to vector<16x128xi32>
    %15 = arith.cmpi eq, %13, %14 : vector<16x128xi32>
    %c1_i32 = arith.constant 1 : i32
    %16 = tpu.dynamic_rotate %8 by %c1_i32 dim 1 : vector<16x128xf32>, i32 -> vector<16x128xf32>
    %17 = vector.shape_cast %11 : vector<16x1xf32> to vector<16x1xf32>
    %18 = vector.broadcast %17 : vector<16x1xf32> to vector<16x128xf32>
    %19 = arith.select %15, %18, %16 : vector<16x128xi1>, vector<16x128xf32>
    %c127_i32 = arith.constant 127 : i32
    %20 = vector.broadcast %c127_i32 : i32 to vector<16x128xi32>
    %21 = arith.cmpi eq, %13, %20 : vector<16x128xi32>
    %c127_i32_8 = arith.constant 127 : i32
    %22 = tpu.dynamic_rotate %5 by %c127_i32_8 dim 1 : vector<16x128xf32>, i32 -> vector<16x128xf32>
    %23 = vector.shape_cast %12 : vector<16x1xf32> to vector<16x1xf32>
    %24 = vector.broadcast %23 : vector<16x1xf32> to vector<16x128xf32>
    %25 = arith.select %21, %24, %22 : vector<16x128xi1>, vector<16x128xf32>
    %c0_9 = arith.constant 0 : index
    %c0_10 = arith.constant 0 : index
    %26 = vector.load %arg5[%c0_9, %c0_10] : memref<16x1xf32, #tpu.memory_space<vmem>>, vector<16x1xf32>
    %27 = arith.addf %6, %19 : vector<16x128xf32>
    %28 = vector.broadcast %26 : vector<16x1xf32> to vector<16x128xf32>
    %29 = arith.addf %27, %28 : vector<16x128xf32>
    %30 = arith.addf %7, %25 : vector<16x128xf32>
    %31 = vector.broadcast %26 : vector<16x1xf32> to vector<16x128xf32>
    %32 = arith.addf %30, %31 : vector<16x128xf32>
    %33 = arith.truncf %29 : vector<16x128xf32> to vector<16x128xbf16>
    %34 = arith.extf %33 : vector<16x128xbf16> to vector<16x128xf32>
    %35 = tpu.bitcast %34 : vector<16x128xf32> -> vector<16x128xi32>
    %36 = arith.truncf %32 : vector<16x128xf32> to vector<16x128xbf16>
    %37 = arith.extf %36 : vector<16x128xbf16> to vector<16x128xf32>
    %38 = tpu.bitcast %37 : vector<16x128xf32> -> vector<16x128xi32>
    %c16_i32 = arith.constant 16 : i32
    %39 = vector.broadcast %c16_i32 : i32 to vector<16x128xi32>
    %40 = arith.shrui %35, %39 : vector<16x128xi32>
    %41 = arith.ori %40, %38 : vector<16x128xi32>
    %c0_11 = arith.constant 0 : index
    %c0_12 = arith.constant 0 : index
    %c0_13 = arith.constant 0 : index
    %42 = vector.load %arg6[%c0_11, %c0_12, %c0_13] : memref<1x16x128xi32, #tpu.memory_space<vmem>>, vector<1x16x128xi32>
    %43 = vector.shape_cast %42 : vector<1x16x128xi32> to vector<16x128xi32>
    %44 = vector.shape_cast %41 : vector<16x128xi32> to vector<1x16x128xi32>
    tpu.vector_store %arg6[%c0_11, %c0_12, %c0_13], %44 {strides = array<i32>} : memref<1x16x128xi32, #tpu.memory_space<vmem>>, vector<1x16x128xi32>,
    return
  }
  func.func @transform_0(%arg0: i32, %arg1: i32) -> (i32, i32, i32) {
    %c0_i32 = arith.constant 0 : i32
    %c0_i32_0 = arith.constant 0 : i32
    return %arg0, %c0_i32, %arg1 : i32, i32, i32
  }
  func.func @transform_1(%arg0: i32, %arg1: i32) -> (i32, i32, i32, i32) {
    %c0_i32 = arith.constant 0 : i32
    %c0_i32_0 = arith.constant 0 : i32
    %c0_i32_1 = arith.constant 0 : i32
    return %arg0, %arg1, %c0_i32, %c0_i32_0 : i32, i32, i32, i32
  }
  func.func @transform_2(%arg0: i32, %arg1: i32) -> (i32, i32) {
    %c0_i32 = arith.constant 0 : i32
    %c0_i32_0 = arith.constant 0 : i32
    %c0_i32_1 = arith.constant 0 : i32
    return %c0_i32, %c0_i32_0 : i32, i32
  }
  func.func @transform_3(%arg0: i32, %arg1: i32) -> (i32, i32) {
    %c0_i32 = arith.constant 0 : i32
    %c0_i32_0 = arith.constant 0 : i32
    %c0_i32_1 = arith.constant 0 : i32
    return %c0_i32, %c0_i32_0 : i32, i32
  }
  func.func @transform_4(%arg0: i32, %arg1: i32) -> (i32, i32, i32) {
    %c0_i32 = arith.constant 0 : i32
    %c0_i32_0 = arith.constant 0 : i32
    return %arg0, %c0_i32, %arg1 : i32, i32, i32
  }
}

module attributes {stable_mosaic.version = 11 : i64} {
  func.func @upsample1d_kernel(%arg0: i32, %arg1: i32, %arg2: memref<1x16x128xf32, #tpu.memory_space<vmem>>, %arg3: memref<1x1x16x2xf32, #tpu.memory_space<vmem>>, %arg4: memref<64x16xbf16, #tpu.memory_space<vmem>>, %arg5: memref<16x1xf32, #tpu.memory_space<vmem>>, %arg6: memref<1x16x128xi32, #tpu.memory_space<vmem>>) attributes {dimension_semantics = [#tpu.dimension_semantics<parallel>, #tpu.dimension_semantics<parallel>], iteration_bounds = array<i64: 2, 1>, scalar_prefetch = 0 : i64, scratch_operands = 0 : i64, tpu.core_type = #tpu.core_type<tc>, window_params = [{transform_indices = @transform_0, window_bounds = array<i64: 1, 16, 128>}, {transform_indices = @transform_1, window_bounds = array<i64: 1, 1, 16, 2>}, {pipeline_mode = #tpu.pipeline_mode<synchronous>, transform_indices = @transform_2, window_bounds = array<i64: 64, 16>}, {pipeline_mode = #tpu.pipeline_mode<synchronous>, transform_indices = @transform_3, window_bounds = array<i64: 16, 1>}, {transform_indices = @transform_4, window_bounds = array<i64: 1, 16, 128>}]} {
    %c0 = arith.constant 0 : index
    %c0_0 = arith.constant 0 : index
    %0 = vector.load %arg4[%c0, %c0_0] : memref<64x16xbf16, #tpu.memory_space<vmem>>, vector<64x16xbf16>
    %c0_1 = arith.constant 0 : index
    %c0_2 = arith.constant 0 : index
    %c0_3 = arith.constant 0 : index
    %1 = vector.load %arg2[%c0_1, %c0_2, %c0_3] : memref<1x16x128xf32, #tpu.memory_space<vmem>>, vector<1x16x128xf32>
    %2 = vector.shape_cast %1 : vector<1x16x128xf32> to vector<16x128xf32>
    %3 = arith.truncf %2 : vector<16x128xf32> to vector<16x128xbf16>
    %cst = arith.constant dense<0.000000e+00> : vector<64x128xf32>
    %4 = tpu.matmul %0, %3, %cst {dimension_numbers = #tpu.dot_dimension_numbers<[1], [0], [0], [1], [0, 0, 1, 1], [], []>} : vector<64x16xbf16>, vector<16x128xbf16>, vector<64x128xf32> -> vector<64x128xf32>
    %5 = vector.extract_strided_slice %4 {offsets = [0, 0], sizes = [16, 128], strides = [1, 1]} : vector<64x128xf32> to vector<16x128xf32>
    %6 = vector.extract_strided_slice %4 {offsets = [16, 0], sizes = [16, 128], strides = [1, 1]} : vector<64x128xf32> to vector<16x128xf32>
    %7 = vector.extract_strided_slice %4 {offsets = [32, 0], sizes = [16, 128], strides = [1, 1]} : vector<64x128xf32> to vector<16x128xf32>
    %8 = vector.extract_strided_slice %4 {offsets = [48, 0], sizes = [16, 128], strides = [1, 1]} : vector<64x128xf32> to vector<16x128xf32>
    %c0_4 = arith.constant 0 : index
    %c0_5 = arith.constant 0 : index
    %c0_6 = arith.constant 0 : index
    %c0_7 = arith.constant 0 : index
    %9 = vector.load %arg3[%c0_4, %c0_5, %c0_6, %c0_7] : memref<1x1x16x2xf32, #tpu.memory_space<vmem>>, vector<1x1x16x2xf32>
    %10 = vector.shape_cast %9 : vector<1x1x16x2xf32> to vector<16x2xf32>
    %11 = vector.extract_strided_slice %10 {offsets = [0, 0], sizes = [16, 1], strides = [1, 1]} : vector<16x2xf32> to vector<16x1xf32>
    %12 = vector.extract_strided_slice %10 {offsets = [0, 1], sizes = [16, 1], strides = [1, 1]} : vector<16x2xf32> to vector<16x1xf32>
    %13 = tpu.iota {dimensions = array<i32: 1>} : vector<16x128xi32>
    %c0_i32 = arith.constant 0 : i32
    %14 = vector.broadcast %c0_i32 : i32 to vector<16x128xi32>
    %15 = arith.cmpi eq, %13, %14 : vector<16x128xi32>
    %c1_i32 = arith.constant 1 : i32
    %16 = tpu.dynamic_rotate %8 by %c1_i32 dim 1 : vector<16x128xf32>, i32 -> vector<16x128xf32>
    %17 = vector.shape_cast %11 : vector<16x1xf32> to vector<16x1xf32>
    %18 = vector.broadcast %17 : vector<16x1xf32> to vector<16x128xf32>
    %19 = arith.select %15, %18, %16 : vector<16x128xi1>, vector<16x128xf32>
    %c127_i32 = arith.constant 127 : i32
    %20 = vector.broadcast %c127_i32 : i32 to vector<16x128xi32>
    %21 = arith.cmpi eq, %13, %20 : vector<16x128xi32>
    %c127_i32_8 = arith.constant 127 : i32
    %22 = tpu.dynamic_rotate %5 by %c127_i32_8 dim 1 : vector<16x128xf32>, i32 -> vector<16x128xf32>
    %23 = vector.shape_cast %12 : vector<16x1xf32> to vector<16x1xf32>
    %24 = vector.broadcast %23 : vector<16x1xf32> to vector<16x128xf32>
    %25 = arith.select %21, %24, %22 : vector<16x128xi1>, vector<16x128xf32>
    %c0_9 = arith.constant 0 : index
    %c0_10 = arith.constant 0 : index
    %26 = vector.load %arg5[%c0_9, %c0_10] : memref<16x1xf32, #tpu.memory_space<vmem>>, vector<16x1xf32>
    %27 = arith.addf %6, %19 : vector<16x128xf32>
    %28 = vector.broadcast %26 : vector<16x1xf32> to vector<16x128xf32>
    %29 = arith.addf %27, %28 : vector<16x128xf32>
    %30 = arith.addf %7, %25 : vector<16x128xf32>
    %31 = vector.broadcast %26 : vector<16x1xf32> to vector<16x128xf32>
    %32 = arith.addf %30, %31 : vector<16x128xf32>
    %33 = arith.truncf %29 : vector<16x128xf32> to vector<16x128xbf16>
    %34 = arith.extf %33 : vector<16x128xbf16> to vector<16x128xf32>
    %35 = tpu.bitcast %34 : vector<16x128xf32> -> vector<16x128xi32>
    %36 = arith.truncf %32 : vector<16x128xf32> to vector<16x128xbf16>
    %37 = arith.extf %36 : vector<16x128xbf16> to vector<16x128xf32>
    %38 = tpu.bitcast %37 : vector<16x128xf32> -> vector<16x128xi32>
    %c16_i32 = arith.constant 16 : i32
    %39 = vector.broadcast %c16_i32 : i32 to vector<16x128xi32>
    %40 = arith.shrui %35, %39 : vector<16x128xi32>
    %41 = arith.ori %40, %38 : vector<16x128xi32>
    %c0_11 = arith.constant 0 : index
    %c0_12 = arith.constant 0 : index
    %c0_13 = arith.constant 0 : index
    %42 = vector.load %arg6[%c0_11, %c0_12, %c0_13] : memref<1x16x128xi32, #tpu.memory_space<vmem>>, vector<1x16x128xi32>
    %43 = vector.shape_cast %42 : vector<1x16x128xi32> to vector<16x128xi32>
    %44 = vector.shape_cast %41 : vector<16x128xi32> to vector<1x16x128xi32>
    tpu.vector_store %arg6[%c0_11, %c0_12, %c0_13], %44 {strides = array<i32>} : memref<1x16x128xi32, #tpu.memory_space<vmem>>, vector<1x16x128xi32>,
    return
  }
  func.func @transform_0(%arg0: i32, %arg1: i32) -> (i32, i32, i32) {
    %c0_i32 = arith.constant 0 : i32
    %c0_i32_0 = arith.constant 0 : i32
    return %arg0, %c0_i32, %arg1 : i32, i32, i32
  }
  func.func @transform_1(%arg0: i32, %arg1: i32) -> (i32, i32, i32, i32) {
    %c0_i32 = arith.constant 0 : i32
    %c0_i32_0 = arith.constant 0 : i32
    %c0_i32_1 = arith.constant 0 : i32
    return %arg0, %arg1, %c0_i32, %c0_i32_0 : i32, i32, i32, i32
  }
  func.func @transform_2(%arg0: i32, %arg1: i32) -> (i32, i32) {
    %c0_i32 = arith.constant 0 : i32
    %c0_i32_0 = arith.constant 0 : i32
    %c0_i32_1 = arith.constant 0 : i32
    return %c0_i32, %c0_i32_0 : i32, i32
  }
  func.func @transform_3(%arg0: i32, %arg1: i32) -> (i32, i32) {
    %c0_i32 = arith.constant 0 : i32
    %c0_i32_0 = arith.constant 0 : i32
    %c0_i32_1 = arith.constant 0 : i32
    return %c0_i32, %c0_i32_0 : i32, i32
  }
  func.func @transform_4(%arg0: i32, %arg1: i32) -> (i32, i32, i32) {
    %c0_i32 = arith.constant 0 : i32
    %c0_i32_0 = arith.constant 0 : i32
    return %arg0, %c0_i32, %arg1 : i32, i32, i32
  }
}

</mosaic_0001>

<llo_original>
// kernel: tpu_custom_call.1
$region0: #{tpu_custom_call.1}
  #allocation0 [shape = 'u32[]', space=smem, size = 0x4, offset = 0x4, fixed_abs, tag = 'smem constant byte address 0x4 - core index']
  #allocation1 [shape = 'u32[144,128]{1,0:T(1,128)}', space=vmem, size = 0x12000, scoped, tag = 'internal scratch']
  %s0 = inlined_call_operand.vmem [shape: f32[2,16,128], index: 0, kind: input, shape index: {}]
  %s1 = inlined_call_operand.vmem [shape: f32[2,1,16,2], index: 1, kind: input, shape index: {}]
  %s2 = inlined_call_operand.vmem [shape: bf16[64,16], index: 2, kind: input, shape index: {}]
  %s3 = inlined_call_operand.vmem [shape: f32[16,1], index: 3, kind: input, shape index: {}]
  %s4 = inlined_call_operand.hbm [shape: u32[2,16,128], index: 4, kind: output, shape index: {}]
  %s5 = sld [smem:[#allocation0]]
  $region49: #{tpu_custom_call.1} parent=0
    _
  %s7 = ssub.s32 1, %s5
  %s8 = scalar_select 0, %s7, %s5
  $region1: #{tpu_custom_call.1} parent=0
    #allocation2 [shape = 'u8[16384]{0}', space=vmem, size = 0x4000, scoped, tag = 'output window, operand 0']
    #allocation3 [shape = 's32[2]{0}', space=sflag, size = 0x8, scoped, tag = 'scoped memory for tpu_custom_call.1']
    %9 = vsyncpa [#allocation3], 0
    %s10 = scalar_lea.sflag [#allocation3], 1
    %11 = vsyncpa %s10, 0
    loop: start=0, step=1, limit=4
    $region2: #{tpu_custom_call.1} parent=1 // loop_pre_header
      _
    $region3: #{tpu_custom_call.1} parent=1 // loop_header
      %s13 = sphi 0, %s17
      %p14 = scmp.ge.s32.totalorder %s13, 4
      %s20 = sphi 0, %s32
      %s21 = sphi 0, %s28
      %s22 = sphi 0, %s20
      %s23 = sphi 0, %s21
      %s24 = sphi 0, %s22
      %s25 = sphi 0, %s23
      %s37 = sphi 0, %s39
      %s40 = sphi 0, %s37
      %s41 = sphi 0, %s40
      %s57 = sphi 0, %s41
      %s65 = sphi 0, %s67
      %s68 = sphi 0, %s65
      %s69 = sphi 0, %s68
      %s85 = sphi 0, %s69
      %s89 = sphi 0, %s89
      %s91 = sphi 0, %s89
      %s92 = sphi 0, %s91
      %s106 = sphi 0, %s92
      %s110 = sphi 0, %s110
      %s112 = sphi 0, %s110
      %s113 = sphi 0, %s112
      %s127 = sphi 0, %s113
      %s135 = sphi 0, %s137
      %s138 = sphi 0, %s135
      %s139 = sphi 0, %s138
      %s155 = sphi 0, %s139
    $region4: #{tpu_custom_call.1} parent=1 // loop_header_branch
      %16 = sbr.rel (%p14) target = $region8
    $region5: #{tpu_custom_call.1} parent=1 // loop_body
      %s18 = ssub.s32 %s13, 1
      %s19 = ssub.s32 %s13, 2
      %s26 = sadd.s32 1, %s21
      %p27 = scmp.ge.s32.totalorder %s26, 1
      %s28 = scalar_select %p27, 0, %s26
      %s29 = sadd.s32 1, %s20
      %s30 = scalar_select %p27, %s29, %s20
      %p31 = scmp.ge.s32.totalorder %s30, 2
      %s32 = scalar_select %p31, 0, %s30
      %s33 = ssub.s32 %s20, %s32
      %s34 = ssub.s32 %s21, %s28
      %s35 = sor.u32 %s33, %s34
      %p36 = scmp.eq.s32.totalorder %s35, 0
      %s38 = sadd.s32 %s37, 1
      %s39 = scalar_select %p36, %s37, %s38
      %p42 = pneg %p36
      %p43 = scmp.eq.s32.totalorder %s13, 1
      %p44 = por %p42, %p43
      %p45 = scmp.ne.s32.totalorder %s37, %s40
      %p46 = scmp.eq.s32.totalorder %s13, 0
      %p47 = por %p45, %p46
      %p48 = scmp.ne.s32.totalorder %s37, %s40
      %p49 = scmp.eq.s32.totalorder %s18, 1
      %p50 = por %p48, %p49
      %p51 = scmp.ne.s32.totalorder %s40, %s41
      %p52 = scmp.eq.s32.totalorder %s18, 0
      %p53 = por %p51, %p52
      %p54 = scmp.ne.s32.totalorder %s40, %s41
      %p55 = scmp.eq.s32.totalorder %s19, 1
      %p56 = por %p54, %p55
      %p58 = scmp.ne.s32.totalorder %s41, %s57
      %p59 = scmp.eq.s32.totalorder %s19, 0
      %p60 = por %p58, %p59
      %s61 = ssub.s32 %s20, %s32
      %s62 = ssub.s32 %s21, %s28
      %s63 = sor.u32 %s61, %s62
      %p64 = scmp.eq.s32.totalorder %s63, 0
      %s66 = sadd.s32 %s65, 1
      %s67 = scalar_select %p64, %s65, %s66
      %p70 = pneg %p64
      %p71 = scmp.eq.s32.totalorder %s13, 1
      %p72 = por %p70, %p71
      %p73 = scmp.ne.s32.totalorder %s65, %s68
      %p74 = scmp.eq.s32.totalorder %s13, 0
      %p75 = por %p73, %p74
      %p76 = scmp.ne.s32.totalorder %s65, %s68
      %p77 = scmp.eq.s32.totalorder %s18, 1
      %p78 = por %p76, %p77
      %p79 = scmp.ne.s32.totalorder %s68, %s69
      %p80 = scmp.eq.s32.totalorder %s18, 0
      %p81 = por %p79, %p80
      %p82 = scmp.ne.s32.totalorder %s68, %s69
      %p83 = scmp.eq.s32.totalorder %s19, 1
      %p84 = por %p82, %p83
      %p86 = scmp.ne.s32.totalorder %s69, %s85
      %p87 = scmp.eq.s32.totalorder %s19, 0
      %p88 = por %p86, %p87
      %s90 = sadd.s32 %s89, 1
      %p93 = scmp.eq.s32.totalorder %s13, 1
      %p94 = scmp.ne.s32.totalorder %s89, %s91
      %p95 = scmp.eq.s32.totalorder %s13, 0
      %p96 = por %p94, %p95
      %p97 = scmp.ne.s32.totalorder %s89, %s91
      %p98 = scmp.eq.s32.totalorder %s18, 1
      %p99 = por %p97, %p98
      %p100 = scmp.ne.s32.totalorder %s91, %s92
      %p101 = scmp.eq.s32.totalorder %s18, 0
      %p102 = por %p100, %p101
      %p103 = scmp.ne.s32.totalorder %s91, %s92
      %p104 = scmp.eq.s32.totalorder %s19, 1
      %p105 = por %p103, %p104
      %p107 = scmp.ne.s32.totalorder %s92, %s106
      %p108 = scmp.eq.s32.totalorder %s19, 0
      %p109 = por %p107, %p108
      %s111 = sadd.s32 %s110, 1
      %p114 = scmp.eq.s32.totalorder %s13, 1
      %p115 = scmp.ne.s32.totalorder %s110, %s112
      %p116 = scmp.eq.s32.totalorder %s13, 0
      %p117 = por %p115, %p116
      %p118 = scmp.ne.s32.totalorder %s110, %s112
      %p119 = scmp.eq.s32.totalorder %s18, 1
      %p120 = por %p118, %p119
      %p121 = scmp.ne.s32.totalorder %s112, %s113
      %p122 = scmp.eq.s32.totalorder %s18, 0
      %p123 = por %p121, %p122
      %p124 = scmp.ne.s32.totalorder %s112, %s113
      %p125 = scmp.eq.s32.totalorder %s19, 1
      %p126 = por %p124, %p125
      %p128 = scmp.ne.s32.totalorder %s113, %s127
      %p129 = scmp.eq.s32.totalorder %s19, 0
      %p130 = por %p128, %p129
      %s131 = ssub.s32 %s20, %s32
      %s132 = ssub.s32 %s21, %s28
      %s133 = sor.u32 %s131, %s132
      %p134 = scmp.eq.s32.totalorder %s133, 0
      %s136 = sadd.s32 %s135, 1
      %s137 = scalar_select %p134, %s135, %s136
      %p140 = pneg %p134
      %p141 = scmp.eq.s32.totalorder %s13, 1
      %p142 = por %p140, %p141
      %p143 = scmp.ne.s32.totalorder %s135, %s138
      %p144 = scmp.eq.s32.totalorder %s13, 0
      %p145 = por %p143, %p144
      %p146 = scmp.ne.s32.totalorder %s135, %s138
      %p147 = scmp.eq.s32.totalorder %s18, 1
      %p148 = por %p146, %p147
      %p149 = scmp.ne.s32.totalorder %s138, %s139
      %p150 = scmp.eq.s32.totalorder %s18, 0
      %p151 = por %p149, %p150
      %p152 = scmp.ne.s32.totalorder %s138, %s139
      %p153 = scmp.eq.s32.totalorder %s19, 1
      %p154 = por %p152, %p153
      %p156 = scmp.ne.s32.totalorder %s139, %s155
      %p157 = scmp.eq.s32.totalorder %s19, 0
      %p158 = por %p156, %p157
      %p159 = scmp.le.s32.totalorder 1, %s13
      %p160 = scmp.lt.s32.totalorder %s13, 3
      %p161 = pnand %p159, %p160
      %p162 = pneg %p161
      // Predicated region
      $region9: #{tpu_custom_call.1} parent=5 // pred_check
        _
      $region10: #{tpu_custom_call.1} parent=5 // pred_check_branch
        %164 = sbr.rel (%p161) target = $region12
      $region11: #{tpu_custom_call.1} parent=5 // pred_region
        %s165 = ssub.s32 %s13, 1
        // Predicated region
        $region13: #{tpu_custom_call.1} parent=11 // pred_check
          %p166 = pneg %p102
        $region14: #{tpu_custom_call.1} parent=11 // pred_check_branch
          %168 = sbr.rel (%p166) target = $region16
        $region15: #{tpu_custom_call.1} parent=11 // pred_region
          _
        $region16: #{tpu_custom_call.1} parent=11 // pred_fallthru
          _
        // Predicated region
        $region17: #{tpu_custom_call.1} parent=11 // pred_check
          %p169 = pneg %p123
        $region18: #{tpu_custom_call.1} parent=11 // pred_check_branch
          %171 = sbr.rel (%p169) target = $region20
        $region19: #{tpu_custom_call.1} parent=11 // pred_region
          _
        $region20: #{tpu_custom_call.1} parent=11 // pred_fallthru
          _
      $region12: #{tpu_custom_call.1} parent=5 // pred_fallthru
        _
      %p172 = scmp.lt.s32.totalorder %s13, 2
      // Predicated region
      $region21: #{tpu_custom_call.1} parent=5 // pred_check
        %p173 = pneg %p172
      $region22: #{tpu_custom_call.1} parent=5 // pred_check_branch
        %175 = sbr.rel (%p173) target = $region24
      $region23: #{tpu_custom_call.1} parent=5 // pred_region
        // Predicated region
        $region25: #{tpu_custom_call.1} parent=23 // pred_check
          %p176 = pneg %p47
        $region26: #{tpu_custom_call.1} parent=23 // pred_check_branch
          %178 = sbr.rel (%p176) target = $region28
        $region27: #{tpu_custom_call.1} parent=23 // pred_region
          %p179 = scmp.lt.s32.totalorder %s20, 1
          %s180 = scalar_select %p179, %s20, 1
          %p181 = scmp.lt.s32.totalorder %s21, 0
          %s182 = scalar_select %p181, %s21, 0
          %s183 = smul.addr %s180, 2
          %s184 = sadd.s32 %s182, %s183
          %s185 = smul.addr %s184, 8
          %s186 = scalar_lea.vmem %s0, %s185
        $region28: #{tpu_custom_call.1} parent=23 // pred_fallthru
          _
        // Predicated region
        $region29: #{tpu_custom_call.1} parent=23 // pred_check
          %p187 = pneg %p75
        $region30: #{tpu_custom_call.1} parent=23 // pred_check_branch
          %189 = sbr.rel (%p187) target = $region32
        $region31: #{tpu_custom_call.1} parent=23 // pred_region
          %p190 = scmp.lt.s32.totalorder %s20, 1
          %s191 = scalar_select %p190, %s20, 1
          %p192 = scmp.lt.s32.totalorder %s21, 0
          %s193 = scalar_select %p192, %s21, 0
          %s194 = smul.addr %s193, 2
          %s195 = smul.addr %s191, 2
          %s196 = sadd.s32 %s194, %s195
          %s197 = smul.addr %s196, 8
          %s198 = scalar_lea.vmem %s1, %s197
        $region32: #{tpu_custom_call.1} parent=23 // pred_fallthru
          _
      $region24: #{tpu_custom_call.1} parent=5 // pred_fallthru
        _
      %p199 = scmp.le.s32.totalorder 1, %s13
      %p200 = scmp.lt.s32.totalorder %s13, 3
      %p201 = pnand %p199, %p200
      %p202 = pneg %p201
      // Predicated region
      $region33: #{tpu_custom_call.1} parent=5 // pred_check
        _
      $region34: #{tpu_custom_call.1} parent=5 // pred_check_branch
        %204 = sbr.rel (%p201) target = $region36
      $region35: #{tpu_custom_call.1} parent=5 // pred_region
        %s205 = ssub.s32 %s13, 1
        %p206 = scmp.lt.s32.totalorder %s22, 1
        %s207 = scalar_select %p206, %s22, 1
        %p208 = scmp.lt.s32.totalorder %s23, 0
        %s209 = scalar_select %p208, %s23, 0
        %s210 = smul.addr %s207, 2
        %s211 = sadd.s32 %s209, %s210
        %s212 = smul.addr %s211, 8
        %s213 = scalar_lea.vmem %s0, %s212
        %p214 = pneg %p53
        %p215 = pneg %p50
        %p216 = scmp.lt.s32.totalorder %s22, 1
        %s217 = scalar_select %p216, %s22, 1
        %p218 = scmp.lt.s32.totalorder %s23, 0
        %s219 = scalar_select %p218, %s23, 0
        %s220 = smul.addr %s219, 2
        %s221 = smul.addr %s217, 2
        %s222 = sadd.s32 %s220, %s221
        %s223 = smul.addr %s222, 8
        %s224 = scalar_lea.vmem %s1, %s223
        %p225 = pneg %p81
        %p226 = pneg %p78
        %p227 = pneg %p102
        %p228 = pneg %p99
        %p229 = pneg %p123
        %p230 = pneg %p120
        %p231 = pneg %p151
        %p232 = pneg %p148
        %s233 = sand.u32 %s138, 1
        %s234 = scalar_lea.sflag [#allocation3], %s233
        %s235 = sand.u32 %s138, 1
        %s236 = smul.addr %s235, 16
        %s237 = scalar_lea.vmem [#allocation2], %s236
        %p238 = scmp.lt.s32.totalorder %s22, 1
        %s239 = scalar_select %p238, %s22, 1
        %p240 = scmp.lt.s32.totalorder %s23, 0
        %s241 = scalar_select %p240, %s23, 0
        %s242 = smul.addr %s239, 2
        %s243 = sadd.s32 %s241, %s242
        %s244 = smul.addr %s243, 8
        %s245 = scalar_lea.vmem %s0, %s244
        %p246 = scmp.lt.s32.totalorder %s22, 1
        %s247 = scalar_select %p246, %s22, 1
        %p248 = scmp.lt.s32.totalorder %s23, 0
        %s249 = scalar_select %p248, %s23, 0
        %s250 = smul.addr %s249, 2
        %s251 = smul.addr %s247, 2
        %s252 = sadd.s32 %s250, %s251
        %s253 = smul.addr %s252, 8
        %s254 = scalar_lea.vmem %s1, %s253
        %v256 = vld [vmem:[%s2] sm:$0xf]
        %v257 = vld [vmem:[%s2 + $0x4] sm:$0xf]
        %v258 = vld [vmem:[%s2 + $0x8] sm:$0xf]
        %v259 = vld [vmem:[%s2 + $0xc] sm:$0xf]
        %v260 = vld [vmem:[%s2 + $0x10] sm:$0xf]
        %v261 = vld [vmem:[%s2 + $0x14] sm:$0xf]
        %v262 = vld [vmem:[%s2 + $0x18] sm:$0xf]
        %v263 = vld [vmem:[%s2 + $0x1c] sm:$0xf]
        %v264 = vld [vmem:[%s245] sm:$0xff]
        %v265 = vld [vmem:[%s245 + $0x8] sm:$0xff]
        %v266 = vpack.c.bf16 %v265, %v264
        %v275 = vunpack.c.l.b16 %v256
        %v276 = vunpack.c.l.b16 %v257
        %v277 = vunpack.c.l.b16 %v258
        %v278 = vunpack.c.l.b16 %v259
        %v279 = vunpack.c.l.b16 %v260
        %v280 = vunpack.c.l.b16 %v261
        %v281 = vunpack.c.l.b16 %v262
        %v282 = vunpack.c.l.b16 %v263
        %v283 = vpack.c.b16 %v276, %v275
        %v284 = vpack.c.b16 %v278, %v277
        %v285 = vpack.c.b16 %v280, %v279
        %v286 = vpack.c.b16 %v282, %v281
        %vm287 = vcmask 130048
        %v289 = vsel %vm287, %v283, 0
        %v292 = vsel %vm287, %v284, 0
        %v295 = vsel %vm287, %v285, 0
        %v298 = vsel %vm287, %v286, 0
        %300 = vmatprep.subr.bf16.mxu0 0
        %301 = vmatpush1.bf16.msra.mxu0 0
        %302 = vmatprep.subr.bf16.mxu0 0
        %303 = vmatpush1.bf16.msra.mxu0 0
        %304 = vmatprep.subr.bf16.mxu0 0
        %305 = vmatpush1.bf16.msra.mxu0 0
        %306 = vmatprep.subr.bf16.mxu0 0
        %307 = vmatpush1.bf16.msra.mxu0 0
        %308 = vmatprep.subr.bf16.mxu0 0
        %309 = vmatpush1.bf16.msra.mxu0 0
        %310 = vmatprep.subr.bf16.mxu0 0
        %311 = vmatpush1.bf16.msra.mxu0 0
        %312 = vmatprep.subr.bf16.mxu0 0
        %313 = vmatpush1.bf16.msra.mxu0 0
        %314 = vmatprep.subr.bf16.mxu0 0
        %315 = vmatpush1.bf16.msra.mxu0 %v266
        %316 = vmatprep.subr.bf16.mxu0 0
        %317 = vmatpush2.bf16.msra.mxu0 0
        %318 = vmatprep.subr.bf16.mxu0 0
        %319 = vmatpush2.bf16.msra.mxu0 0
        %320 = vmatprep.subr.bf16.mxu0 0
        %321 = vmatpush2.bf16.msra.mxu0 0
        %322 = vmatprep.subr.bf16.mxu0 0
        %323 = vmatpush2.bf16.msra.mxu0 0
        %324 = vmatprep.subr.bf16.mxu0 0
        %325 = vmatpush2.bf16.msra.mxu0 0
        %326 = vmatprep.subr.bf16.mxu0 0
        %327 = vmatpush2.bf16.msra.mxu0 0
        %328 = vmatprep.subr.bf16.mxu0 0
        %329 = vmatpush2.bf16.msra.mxu0 0
        %330 = vmatprep.subr.bf16.mxu0 0
        %331 = vmatpush2.bf16.msra.mxu0 0
        %332 = vmatprep.mubr.bf16.mxu0 0
        %333 = vmatmul.mubr.bf16.gmra.mxu0 %v289
        %v334 = vpop.f32.mrf.mxu0
        %v335 = vadd.f32 0.0, %v334
        %v336 = vpop.f32.mrf.mxu0
        %v337 = vpop.f32.mrf.mxu0
        %v338 = vadd.f32 0.0, %v337
        %v339 = vpop.f32.mrf.mxu0
        %340 = vmatprep.mubr.bf16.mxu0 0
        %341 = vmatmul.mubr.bf16.gmra.mxu0 %v292
        %v342 = vpop.f32.mrf.mxu0
        %v343 = vadd.f32 0.0, %v342
        %v344 = vpop.f32.mrf.mxu0
        %v345 = vpop.f32.mrf.mxu0
        %v346 = vadd.f32 0.0, %v345
        %v347 = vpop.f32.mrf.mxu0
        %348 = vmatprep.mubr.bf16.mxu0 0
        %349 = vmatmul.mubr.bf16.gmra.mxu0 %v295
        %v350 = vpop.f32.mrf.mxu0
        %v351 = vadd.f32 0.0, %v350
        %v352 = vpop.f32.mrf.mxu0
        %v353 = vpop.f32.mrf.mxu0
        %v354 = vadd.f32 0.0, %v353
        %v355 = vpop.f32.mrf.mxu0
        %356 = vmatprep.mubr.bf16.mxu0 0
        %357 = vmatmul.mubr.bf16.gmra.mxu0 %v298
        %v358 = vpop.f32.mrf.mxu0
        %v359 = vadd.f32 0.0, %v358
        %v360 = vpop.f32.mrf.mxu0
        %v361 = vpop.f32.mrf.mxu0
        %v362 = vadd.f32 0.0, %v361
        %v363 = vpop.f32.mrf.mxu0
        %364 = vdwg.mxu0
        %v365 = vld [vmem:[%s254] sm:$0xff]
        %v366 = vld [vmem:[%s254 + $0x8] sm:$0xff]
        %v367 = vlaneseq
        %v368 = vand.u32 %v367, 127
        %vm369 = vcmp.eq.s32.totalorder %v368, 0
        %370 = vrot.lane.b32.xlu0 %v359, 1
        %v371 = vpop.permute.xlu0 %370
        %372 = vrot.lane.b32.xlu0 %v362, 1
        %v373 = vpop.permute.xlu0 %372
        %375 = vset.pattern.permute.xlu0 0
        %376 = vperm.xlu0 %375, %v365
        %v377 = vpop.permute.xlu0 %376
        %380 = vset.pattern.permute.xlu0 0
        %381 = vperm.xlu0 %380, %v366
        %v382 = vpop.permute.xlu0 %381
        %v384 = vsel %vm369, %v377, %v371
        %v385 = vsel %vm369, %v382, %v373
        %vm386 = vcmp.eq.s32.totalorder %v368, 127
        %387 = vrot.lane.b32.xlu0 %v335, 127
        %v388 = vpop.permute.xlu0 %387
        %389 = vrot.lane.b32.xlu0 %v338, 127
        %v390 = vpop.permute.xlu0 %389
        %391 = vset.pattern.permute.xlu0 1
        %392 = vperm.xlu0 %391, %v365
        %v393 = vpop.permute.xlu0 %392
        %395 = vset.pattern.permute.xlu0 1
        %396 = vperm.xlu0 %395, %v366
        %v397 = vpop.permute.xlu0 %396
        %v399 = vsel %vm386, %v393, %v388
        %v400 = vsel %vm386, %v397, %v390
        %v401 = vld [vmem:[%s3] sm:$0xff]
        %v402 = vld [vmem:[%s3 + $0x8] sm:$0xff]
        %v403 = vadd.f32 %v343, %v384
        %v404 = vadd.f32 %v346, %v385
        %406 = vset.pattern.permute.xlu0 0
        %407 = vperm.xlu0 %406, %v401
        %v408 = vpop.permute.xlu0 %407
        %411 = vset.pattern.permute.xlu0 0
        %412 = vperm.xlu0 %411, %v402
        %v413 = vpop.permute.xlu0 %412
        %v415 = vadd.f32 %v403, %v408
        %v416 = vadd.f32 %v404, %v413
        %v417 = vadd.f32 %v351, %v399
        %v418 = vadd.f32 %v354, %v400
        %v419 = vadd.f32 %v417, %v408
        %v420 = vadd.f32 %v418, %v413
        %v421 = vpack.c.bf16 %v416, %v415
        %v422 = vunpack.c.l.bf16 %v421
        %v423 = vunpack.c.h.bf16 %v421
        %v426 = vpack.c.bf16 %v420, %v419
        %v427 = vunpack.c.l.bf16 %v426
        %v428 = vunpack.c.h.bf16 %v426
        %v431 = vshrl.u32 %v422, 16
        %v432 = vshrl.u32 %v423, 16
        %v433 = vor.u32 %v431, %v427
        %v434 = vor.u32 %v432, %v428
        %435 = vst [vmem:[%s237] sm:$0xff] %v433
        %436 = vst [vmem:[%s237 + $0x8] sm:$0xff] %v434
        %s437 = sand.u32 %s138, 1
        %s438 = scalar_lea.sflag [#allocation3], %s437
        %s439 = sand.u32 %s138, 1
        %s440 = smul.addr %s439, 16
        %s441 = scalar_lea.vmem [#allocation2], %s440
        // Predicated region
        $region37: #{tpu_custom_call.1} parent=35 // pred_check
          %p442 = pneg %p148
        $region38: #{tpu_custom_call.1} parent=35 // pred_check_branch
          %444 = sbr.rel (%p442) target = $region40
        $region39: #{tpu_custom_call.1} parent=35 // pred_region
          %s446 = ssub.s32 256, 256
          %447 = vsyncadd %s438, %s446
          %s448 = smul.addr %s22, 2
          %s449 = sadd.s32 %s23, %s448
          %s450 = smul.addr %s449, 128
          %s451 = scalar_lea.hbm %s4, %s450
          %s452 = sshll.u32 %s441, 4
          %s453 = int_to_ptr.vmem [resolvable:$true] %s452
          %458 = dma.vmem_to_hbm [thread:$0]  %s453, 256, %s451, %s438, 128, 128, 8
        $region40: #{tpu_custom_call.1} parent=35 // pred_fallthru
          _
      $region36: #{tpu_custom_call.1} parent=5 // pred_fallthru
        _
      %p459 = scmp.le.s32.totalorder 2, %s13
      // Predicated region
      $region41: #{tpu_custom_call.1} parent=5 // pred_check
        %p460 = pneg %p459
      $region42: #{tpu_custom_call.1} parent=5 // pred_check_branch
        %462 = sbr.rel (%p460) target = $region44
      $region43: #{tpu_custom_call.1} parent=5 // pred_region
        %s463 = ssub.s32 %s13, 2
        // Predicated region
        $region45: #{tpu_custom_call.1} parent=43 // pred_check
          %p464 = pneg %p154
        $region46: #{tpu_custom_call.1} parent=43 // pred_check_branch
          %466 = sbr.rel (%p464) target = $region48
        $region47: #{tpu_custom_call.1} parent=43 // pred_region
          %s467 = sand.u32 %s139, 1
          %s468 = scalar_lea.sflag [#allocation3], %s467
          %s469 = sand.u32 %s139, 1
          %s470 = smul.addr %s469, 16
          %s471 = scalar_lea.vmem [#allocation2], %s470
          %472 = dma.done %s468, 256
        $region48: #{tpu_custom_call.1} parent=43 // pred_fallthru
          _
      $region44: #{tpu_custom_call.1} parent=5 // pred_fallthru
        _
    $region6: #{tpu_custom_call.1} parent=1 // loop_footer
      %s17 = sadd.s32 1, %s13
    $region7: #{tpu_custom_call.1} parent=1 // loop_footer_branch
      %12 = sbr.rel target = $region3
    $region8: #{tpu_custom_call.1} parent=1 // loop_exit
      _
    %473 = vsyncpa [#allocation3], 1
    %s474 = scalar_lea.sflag [#allocation3], 1
    %475 = vsyncpa %s474, 1

// kernel: tpu_custom_call.1
$region0: #{tpu_custom_call.1}
  #allocation0 [shape = 'u32[]', space=smem, size = 0x4, offset = 0x4, fixed_abs, tag = 'smem constant byte address 0x4 - core index']
  #allocation1 [shape = 'u32[144,128]{1,0:T(1,128)}', space=vmem, size = 0x12000, scoped, tag = 'internal scratch']
  %s0 = inlined_call_operand.vmem [shape: f32[2,16,128], index: 0, kind: input, shape index: {}]
  %s1 = inlined_call_operand.vmem [shape: f32[2,1,16,2], index: 1, kind: input, shape index: {}]
  %s2 = inlined_call_operand.vmem [shape: bf16[64,16], index: 2, kind: input, shape index: {}]
  %s3 = inlined_call_operand.vmem [shape: f32[16,1], index: 3, kind: input, shape index: {}]
  %s4 = inlined_call_operand.hbm [shape: u32[2,16,128], index: 4, kind: output, shape index: {}]
  %s5 = sld [smem:[#allocation0]]
  $region49: #{tpu_custom_call.1} parent=0
    _
  %s7 = ssub.s32 1, %s5
  %s8 = scalar_select 0, %s7, %s5
  $region1: #{tpu_custom_call.1} parent=0
    #allocation2 [shape = 'u8[16384]{0}', space=vmem, size = 0x4000, scoped, tag = 'output window, operand 0']
    #allocation3 [shape = 's32[2]{0}', space=sflag, size = 0x8, scoped, tag = 'scoped memory for tpu_custom_call.1']
    %9 = vsyncpa [#allocation3], 0
    %s10 = scalar_lea.sflag [#allocation3], 1
    %11 = vsyncpa %s10, 0
    loop: start=0, step=1, limit=4
    $region2: #{tpu_custom_call.1} parent=1 // loop_pre_header
      _
    $region3: #{tpu_custom_call.1} parent=1 // loop_header
      %s13 = sphi 0, %s17
      %p14 = scmp.ge.s32.totalorder %s13, 4
      %s20 = sphi 0, %s32
      %s21 = sphi 0, %s28
      %s22 = sphi 0, %s20
      %s23 = sphi 0, %s21
      %s24 = sphi 0, %s22
      %s25 = sphi 0, %s23
      %s37 = sphi 0, %s39
      %s40 = sphi 0, %s37
      %s41 = sphi 0, %s40
      %s57 = sphi 0, %s41
      %s65 = sphi 0, %s67
      %s68 = sphi 0, %s65
      %s69 = sphi 0, %s68
      %s85 = sphi 0, %s69
      %s89 = sphi 0, %s89
      %s91 = sphi 0, %s89
      %s92 = sphi 0, %s91
      %s106 = sphi 0, %s92
      %s110 = sphi 0, %s110
      %s112 = sphi 0, %s110
      %s113 = sphi 0, %s112
      %s127 = sphi 0, %s113
      %s135 = sphi 0, %s137
      %s138 = sphi 0, %s135
      %s139 = sphi 0, %s138
      %s155 = sphi 0, %s139
    $region4: #{tpu_custom_call.1} parent=1 // loop_header_branch
      %16 = sbr.rel (%p14) target = $region8
    $region5: #{tpu_custom_call.1} parent=1 // loop_body
      %s18 = ssub.s32 %s13, 1
      %s19 = ssub.s32 %s13, 2
      %s26 = sadd.s32 1, %s21
      %p27 = scmp.ge.s32.totalorder %s26, 1
      %s28 = scalar_select %p27, 0, %s26
      %s29 = sadd.s32 1, %s20
      %s30 = scalar_select %p27, %s29, %s20
      %p31 = scmp.ge.s32.totalorder %s30, 2
      %s32 = scalar_select %p31, 0, %s30
      %s33 = ssub.s32 %s20, %s32
      %s34 = ssub.s32 %s21, %s28
      %s35 = sor.u32 %s33, %s34
      %p36 = scmp.eq.s32.totalorder %s35, 0
      %s38 = sadd.s32 %s37, 1
      %s39 = scalar_select %p36, %s37, %s38
      %p42 = pneg %p36
      %p43 = scmp.eq.s32.totalorder %s13, 1
      %p44 = por %p42, %p43
      %p45 = scmp.ne.s32.totalorder %s37, %s40
      %p46 = scmp.eq.s32.totalorder %s13, 0
      %p47 = por %p45, %p46
      %p48 = scmp.ne.s32.totalorder %s37, %s40
      %p49 = scmp.eq.s32.totalorder %s18, 1
      %p50 = por %p48, %p49
      %p51 = scmp.ne.s32.totalorder %s40, %s41
      %p52 = scmp.eq.s32.totalorder %s18, 0
      %p53 = por %p51, %p52
      %p54 = scmp.ne.s32.totalorder %s40, %s41
      %p55 = scmp.eq.s32.totalorder %s19, 1
      %p56 = por %p54, %p55
      %p58 = scmp.ne.s32.totalorder %s41, %s57
      %p59 = scmp.eq.s32.totalorder %s19, 0
      %p60 = por %p58, %p59
      %s61 = ssub.s32 %s20, %s32
      %s62 = ssub.s32 %s21, %s28
      %s63 = sor.u32 %s61, %s62
      %p64 = scmp.eq.s32.totalorder %s63, 0
      %s66 = sadd.s32 %s65, 1
      %s67 = scalar_select %p64, %s65, %s66
      %p70 = pneg %p64
      %p71 = scmp.eq.s32.totalorder %s13, 1
      %p72 = por %p70, %p71
      %p73 = scmp.ne.s32.totalorder %s65, %s68
      %p74 = scmp.eq.s32.totalorder %s13, 0
      %p75 = por %p73, %p74
      %p76 = scmp.ne.s32.totalorder %s65, %s68
      %p77 = scmp.eq.s32.totalorder %s18, 1
      %p78 = por %p76, %p77
      %p79 = scmp.ne.s32.totalorder %s68, %s69
      %p80 = scmp.eq.s32.totalorder %s18, 0
      %p81 = por %p79, %p80
      %p82 = scmp.ne.s32.totalorder %s68, %s69
      %p83 = scmp.eq.s32.totalorder %s19, 1
      %p84 = por %p82, %p83
      %p86 = scmp.ne.s32.totalorder %s69, %s85
      %p87 = scmp.eq.s32.totalorder %s19, 0
      %p88 = por %p86, %p87
      %s90 = sadd.s32 %s89, 1
      %p93 = scmp.eq.s32.totalorder %s13, 1
      %p94 = scmp.ne.s32.totalorder %s89, %s91
      %p95 = scmp.eq.s32.totalorder %s13, 0
      %p96 = por %p94, %p95
      %p97 = scmp.ne.s32.totalorder %s89, %s91
      %p98 = scmp.eq.s32.totalorder %s18, 1
      %p99 = por %p97, %p98
      %p100 = scmp.ne.s32.totalorder %s91, %s92
      %p101 = scmp.eq.s32.totalorder %s18, 0
      %p102 = por %p100, %p101
      %p103 = scmp.ne.s32.totalorder %s91, %s92
      %p104 = scmp.eq.s32.totalorder %s19, 1
      %p105 = por %p103, %p104
      %p107 = scmp.ne.s32.totalorder %s92, %s106
      %p108 = scmp.eq.s32.totalorder %s19, 0
      %p109 = por %p107, %p108
      %s111 = sadd.s32 %s110, 1
      %p114 = scmp.eq.s32.totalorder %s13, 1
      %p115 = scmp.ne.s32.totalorder %s110, %s112
      %p116 = scmp.eq.s32.totalorder %s13, 0
      %p117 = por %p115, %p116
      %p118 = scmp.ne.s32.totalorder %s110, %s112
      %p119 = scmp.eq.s32.totalorder %s18, 1
      %p120 = por %p118, %p119
      %p121 = scmp.ne.s32.totalorder %s112, %s113
      %p122 = scmp.eq.s32.totalorder %s18, 0
      %p123 = por %p121, %p122
      %p124 = scmp.ne.s32.totalorder %s112, %s113
      %p125 = scmp.eq.s32.totalorder %s19, 1
      %p126 = por %p124, %p125
      %p128 = scmp.ne.s32.totalorder %s113, %s127
      %p129 = scmp.eq.s32.totalorder %s19, 0
      %p130 = por %p128, %p129
      %s131 = ssub.s32 %s20, %s32
      %s132 = ssub.s32 %s21, %s28
      %s133 = sor.u32 %s131, %s132
      %p134 = scmp.eq.s32.totalorder %s133, 0
      %s136 = sadd.s32 %s135, 1
      %s137 = scalar_select %p134, %s135, %s136
      %p140 = pneg %p134
      %p141 = scmp.eq.s32.totalorder %s13, 1
      %p142 = por %p140, %p141
      %p143 = scmp.ne.s32.totalorder %s135, %s138
      %p144 = scmp.eq.s32.totalorder %s13, 0
      %p145 = por %p143, %p144
      %p146 = scmp.ne.s32.totalorder %s135, %s138
      %p147 = scmp.eq.s32.totalorder %s18, 1
      %p148 = por %p146, %p147
      %p149 = scmp.ne.s32.totalorder %s138, %s139
      %p150 = scmp.eq.s32.totalorder %s18, 0
      %p151 = por %p149, %p150
      %p152 = scmp.ne.s32.totalorder %s138, %s139
      %p153 = scmp.eq.s32.totalorder %s19, 1
      %p154 = por %p152, %p153
      %p156 = scmp.ne.s32.totalorder %s139, %s155
      %p157 = scmp.eq.s32.totalorder %s19, 0
      %p158 = por %p156, %p157
      %p159 = scmp.le.s32.totalorder 1, %s13
      %p160 = scmp.lt.s32.totalorder %s13, 3
      %p161 = pnand %p159, %p160
      %p162 = pneg %p161
      // Predicated region
      $region9: #{tpu_custom_call.1} parent=5 // pred_check
        _
      $region10: #{tpu_custom_call.1} parent=5 // pred_check_branch
        %164 = sbr.rel (%p161) target = $region12
      $region11: #{tpu_custom_call.1} parent=5 // pred_region
        %s165 = ssub.s32 %s13, 1
        // Predicated region
        $region13: #{tpu_custom_call.1} parent=11 // pred_check
          %p166 = pneg %p102
        $region14: #{tpu_custom_call.1} parent=11 // pred_check_branch
          %168 = sbr.rel (%p166) target = $region16
        $region15: #{tpu_custom_call.1} parent=11 // pred_region
          _
        $region16: #{tpu_custom_call.1} parent=11 // pred_fallthru
          _
        // Predicated region
        $region17: #{tpu_custom_call.1} parent=11 // pred_check
          %p169 = pneg %p123
        $region18: #{tpu_custom_call.1} parent=11 // pred_check_branch
          %171 = sbr.rel (%p169) target = $region20
        $region19: #{tpu_custom_call.1} parent=11 // pred_region
          _
        $region20: #{tpu_custom_call.1} parent=11 // pred_fallthru
          _
      $region12: #{tpu_custom_call.1} parent=5 // pred_fallthru
        _
      %p172 = scmp.lt.s32.totalorder %s13, 2
      // Predicated region
      $region21: #{tpu_custom_call.1} parent=5 // pred_check
        %p173 = pneg %p172
      $region22: #{tpu_custom_call.1} parent=5 // pred_check_branch
        %175 = sbr.rel (%p173) target = $region24
      $region23: #{tpu_custom_call.1} parent=5 // pred_region
        // Predicated region
        $region25: #{tpu_custom_call.1} parent=23 // pred_check
          %p176 = pneg %p47
        $region26: #{tpu_custom_call.1} parent=23 // pred_check_branch
          %178 = sbr.rel (%p176) target = $region28
        $region27: #{tpu_custom_call.1} parent=23 // pred_region
          %p179 = scmp.lt.s32.totalorder %s20, 1
          %s180 = scalar_select %p179, %s20, 1
          %p181 = scmp.lt.s32.totalorder %s21, 0
          %s182 = scalar_select %p181, %s21, 0
          %s183 = smul.addr %s180, 2
          %s184 = sadd.s32 %s182, %s183
          %s185 = smul.addr %s184, 8
          %s186 = scalar_lea.vmem %s0, %s185
        $region28: #{tpu_custom_call.1} parent=23 // pred_fallthru
          _
        // Predicated region
        $region29: #{tpu_custom_call.1} parent=23 // pred_check
          %p187 = pneg %p75
        $region30: #{tpu_custom_call.1} parent=23 // pred_check_branch
          %189 = sbr.rel (%p187) target = $region32
        $region31: #{tpu_custom_call.1} parent=23 // pred_region
          %p190 = scmp.lt.s32.totalorder %s20, 1
          %s191 = scalar_select %p190, %s20, 1
          %p192 = scmp.lt.s32.totalorder %s21, 0
          %s193 = scalar_select %p192, %s21, 0
          %s194 = smul.addr %s193, 2
          %s195 = smul.addr %s191, 2
          %s196 = sadd.s32 %s194, %s195
          %s197 = smul.addr %s196, 8
          %s198 = scalar_lea.vmem %s1, %s197
        $region32: #{tpu_custom_call.1} parent=23 // pred_fallthru
          _
      $region24: #{tpu_custom_call.1} parent=5 // pred_fallthru
        _
      %p199 = scmp.le.s32.totalorder 1, %s13
      %p200 = scmp.lt.s32.totalorder %s13, 3
      %p201 = pnand %p199, %p200
      %p202 = pneg %p201
      // Predicated region
      $region33: #{tpu_custom_call.1} parent=5 // pred_check
        _
      $region34: #{tpu_custom_call.1} parent=5 // pred_check_branch
        %204 = sbr.rel (%p201) target = $region36
      $region35: #{tpu_custom_call.1} parent=5 // pred_region
        %s205 = ssub.s32 %s13, 1
        %p206 = scmp.lt.s32.totalorder %s22, 1
        %s207 = scalar_select %p206, %s22, 1
        %p208 = scmp.lt.s32.totalorder %s23, 0
        %s209 = scalar_select %p208, %s23, 0
        %s210 = smul.addr %s207, 2
        %s211 = sadd.s32 %s209, %s210
        %s212 = smul.addr %s211, 8
        %s213 = scalar_lea.vmem %s0, %s212
        %p214 = pneg %p53
        %p215 = pneg %p50
        %p216 = scmp.lt.s32.totalorder %s22, 1
        %s217 = scalar_select %p216, %s22, 1
        %p218 = scmp.lt.s32.totalorder %s23, 0
        %s219 = scalar_select %p218, %s23, 0
        %s220 = smul.addr %s219, 2
        %s221 = smul.addr %s217, 2
        %s222 = sadd.s32 %s220, %s221
        %s223 = smul.addr %s222, 8
        %s224 = scalar_lea.vmem %s1, %s223
        %p225 = pneg %p81
        %p226 = pneg %p78
        %p227 = pneg %p102
        %p228 = pneg %p99
        %p229 = pneg %p123
        %p230 = pneg %p120
        %p231 = pneg %p151
        %p232 = pneg %p148
        %s233 = sand.u32 %s138, 1
        %s234 = scalar_lea.sflag [#allocation3], %s233
        %s235 = sand.u32 %s138, 1
        %s236 = smul.addr %s235, 16
        %s237 = scalar_lea.vmem [#allocation2], %s236
        %p238 = scmp.lt.s32.totalorder %s22, 1
        %s239 = scalar_select %p238, %s22, 1
        %p240 = scmp.lt.s32.totalorder %s23, 0
        %s241 = scalar_select %p240, %s23, 0
        %s242 = smul.addr %s239, 2
        %s243 = sadd.s32 %s241, %s242
        %s244 = smul.addr %s243, 8
        %s245 = scalar_lea.vmem %s0, %s244
        %p246 = scmp.lt.s32.totalorder %s22, 1
        %s247 = scalar_select %p246, %s22, 1
        %p248 = scmp.lt.s32.totalorder %s23, 0
        %s249 = scalar_select %p248, %s23, 0
        %s250 = smul.addr %s249, 2
        %s251 = smul.addr %s247, 2
        %s252 = sadd.s32 %s250, %s251
        %s253 = smul.addr %s252, 8
        %s254 = scalar_lea.vmem %s1, %s253
        %v256 = vld [vmem:[%s2] sm:$0xf]
        %v257 = vld [vmem:[%s2 + $0x4] sm:$0xf]
        %v258 = vld [vmem:[%s2 + $0x8] sm:$0xf]
        %v259 = vld [vmem:[%s2 + $0xc] sm:$0xf]
        %v260 = vld [vmem:[%s2 + $0x10] sm:$0xf]
        %v261 = vld [vmem:[%s2 + $0x14] sm:$0xf]
        %v262 = vld [vmem:[%s2 + $0x18] sm:$0xf]
        %v263 = vld [vmem:[%s2 + $0x1c] sm:$0xf]
        %v264 = vld [vmem:[%s245] sm:$0xff]
        %v265 = vld [vmem:[%s245 + $0x8] sm:$0xff]
        %v266 = vpack.c.bf16 %v265, %v264
        %v275 = vunpack.c.l.b16 %v256
        %v276 = vunpack.c.l.b16 %v257
        %v277 = vunpack.c.l.b16 %v258
        %v278 = vunpack.c.l.b16 %v259
        %v279 = vunpack.c.l.b16 %v260
        %v280 = vunpack.c.l.b16 %v261
        %v281 = vunpack.c.l.b16 %v262
        %v282 = vunpack.c.l.b16 %v263
        %v283 = vpack.c.b16 %v276, %v275
        %v284 = vpack.c.b16 %v278, %v277
        %v285 = vpack.c.b16 %v280, %v279
        %v286 = vpack.c.b16 %v282, %v281
        %vm287 = vcmask 130048
        %v289 = vsel %vm287, %v283, 0
        %v292 = vsel %vm287, %v284, 0
        %v295 = vsel %vm287, %v285, 0
        %v298 = vsel %vm287, %v286, 0
        %300 = vmatprep.subr.bf16.mxu0 0
        %301 = vmatpush1.bf16.msra.mxu0 0
        %302 = vmatprep.subr.bf16.mxu0 0
        %303 = vmatpush1.bf16.msra.mxu0 0
        %304 = vmatprep.subr.bf16.mxu0 0
        %305 = vmatpush1.bf16.msra.mxu0 0
        %306 = vmatprep.subr.bf16.mxu0 0
        %307 = vmatpush1.bf16.msra.mxu0 0
        %308 = vmatprep.subr.bf16.mxu0 0
        %309 = vmatpush1.bf16.msra.mxu0 0
        %310 = vmatprep.subr.bf16.mxu0 0
        %311 = vmatpush1.bf16.msra.mxu0 0
        %312 = vmatprep.subr.bf16.mxu0 0
        %313 = vmatpush1.bf16.msra.mxu0 0
        %314 = vmatprep.subr.bf16.mxu0 0
        %315 = vmatpush1.bf16.msra.mxu0 %v266
        %316 = vmatprep.subr.bf16.mxu0 0
        %317 = vmatpush2.bf16.msra.mxu0 0
        %318 = vmatprep.subr.bf16.mxu0 0
        %319 = vmatpush2.bf16.msra.mxu0 0
        %320 = vmatprep.subr.bf16.mxu0 0
        %321 = vmatpush2.bf16.msra.mxu0 0
        %322 = vmatprep.subr.bf16.mxu0 0
        %323 = vmatpush2.bf16.msra.mxu0 0
        %324 = vmatprep.subr.bf16.mxu0 0
        %325 = vmatpush2.bf16.msra.mxu0 0
        %326 = vmatprep.subr.bf16.mxu0 0
        %327 = vmatpush2.bf16.msra.mxu0 0
        %328 = vmatprep.subr.bf16.mxu0 0
        %329 = vmatpush2.bf16.msra.mxu0 0
        %330 = vmatprep.subr.bf16.mxu0 0
        %331 = vmatpush2.bf16.msra.mxu0 0
        %332 = vmatprep.mubr.bf16.mxu0 0
        %333 = vmatmul.mubr.bf16.gmra.mxu0 %v289
        %v334 = vpop.f32.mrf.mxu0
        %v335 = vadd.f32 0.0, %v334
        %v336 = vpop.f32.mrf.mxu0
        %v337 = vpop.f32.mrf.mxu0
        %v338 = vadd.f32 0.0, %v337
        %v339 = vpop.f32.mrf.mxu0
        %340 = vmatprep.mubr.bf16.mxu0 0
        %341 = vmatmul.mubr.bf16.gmra.mxu0 %v292
        %v342 = vpop.f32.mrf.mxu0
        %v343 = vadd.f32 0.0, %v342
        %v344 = vpop.f32.mrf.mxu0
        %v345 = vpop.f32.mrf.mxu0
        %v346 = vadd.f32 0.0, %v345
        %v347 = vpop.f32.mrf.mxu0
        %348 = vmatprep.mubr.bf16.mxu0 0
        %349 = vmatmul.mubr.bf16.gmra.mxu0 %v295
        %v350 = vpop.f32.mrf.mxu0
        %v351 = vadd.f32 0.0, %v350
        %v352 = vpop.f32.mrf.mxu0
        %v353 = vpop.f32.mrf.mxu0
        %v354 = vadd.f32 0.0, %v353
        %v355 = vpop.f32.mrf.mxu0
        %356 = vmatprep.mubr.bf16.mxu0 0
        %357 = vmatmul.mubr.bf16.gmra.mxu0 %v298
        %v358 = vpop.f32.mrf.mxu0
        %v359 = vadd.f32 0.0, %v358
        %v360 = vpop.f32.mrf.mxu0
        %v361 = vpop.f32.mrf.mxu0
        %v362 = vadd.f32 0.0, %v361
        %v363 = vpop.f32.mrf.mxu0
        %364 = vdwg.mxu0
        %v365 = vld [vmem:[%s254] sm:$0xff]
        %v366 = vld [vmem:[%s254 + $0x8] sm:$0xff]
        %v367 = vlaneseq
        %v368 = vand.u32 %v367, 127
        %vm369 = vcmp.eq.s32.totalorder %v368, 0
        %370 = vrot.lane.b32.xlu0 %v359, 1
        %v371 = vpop.permute.xlu0 %370
        %372 = vrot.lane.b32.xlu0 %v362, 1
        %v373 = vpop.permute.xlu0 %372
        %375 = vset.pattern.permute.xlu0 0
        %376 = vperm.xlu0 %375, %v365
        %v377 = vpop.permute.xlu0 %376
        %380 = vset.pattern.permute.xlu0 0
        %381 = vperm.xlu0 %380, %v366
        %v382 = vpop.permute.xlu0 %381
        %v384 = vsel %vm369, %v377, %v371
        %v385 = vsel %vm369, %v382, %v373
        %vm386 = vcmp.eq.s32.totalorder %v368, 127
        %387 = vrot.lane.b32.xlu0 %v335, 127
        %v388 = vpop.permute.xlu0 %387
        %389 = vrot.lane.b32.xlu0 %v338, 127
        %v390 = vpop.permute.xlu0 %389
        %391 = vset.pattern.permute.xlu0 1
        %392 = vperm.xlu0 %391, %v365
        %v393 = vpop.permute.xlu0 %392
        %395 = vset.pattern.permute.xlu0 1
        %396 = vperm.xlu0 %395, %v366
        %v397 = vpop.permute.xlu0 %396
        %v399 = vsel %vm386, %v393, %v388
        %v400 = vsel %vm386, %v397, %v390
        %v401 = vld [vmem:[%s3] sm:$0xff]
        %v402 = vld [vmem:[%s3 + $0x8] sm:$0xff]
        %v403 = vadd.f32 %v343, %v384
        %v404 = vadd.f32 %v346, %v385
        %406 = vset.pattern.permute.xlu0 0
        %407 = vperm.xlu0 %406, %v401
        %v408 = vpop.permute.xlu0 %407
        %411 = vset.pattern.permute.xlu0 0
        %412 = vperm.xlu0 %411, %v402
        %v413 = vpop.permute.xlu0 %412
        %v415 = vadd.f32 %v403, %v408
        %v416 = vadd.f32 %v404, %v413
        %v417 = vadd.f32 %v351, %v399
        %v418 = vadd.f32 %v354, %v400
        %v419 = vadd.f32 %v417, %v408
        %v420 = vadd.f32 %v418, %v413
        %v421 = vpack.c.bf16 %v416, %v415
        %v422 = vunpack.c.l.bf16 %v421
        %v423 = vunpack.c.h.bf16 %v421
        %v426 = vpack.c.bf16 %v420, %v419
        %v427 = vunpack.c.l.bf16 %v426
        %v428 = vunpack.c.h.bf16 %v426
        %v431 = vshrl.u32 %v422, 16
        %v432 = vshrl.u32 %v423, 16
        %v433 = vor.u32 %v431, %v427
        %v434 = vor.u32 %v432, %v428
        %435 = vst [vmem:[%s237] sm:$0xff] %v433
        %436 = vst [vmem:[%s237 + $0x8] sm:$0xff] %v434
        %s437 = sand.u32 %s138, 1
        %s438 = scalar_lea.sflag [#allocation3], %s437
        %s439 = sand.u32 %s138, 1
        %s440 = smul.addr %s439, 16
        %s441 = scalar_lea.vmem [#allocation2], %s440
        // Predicated region
        $region37: #{tpu_custom_call.1} parent=35 // pred_check
          %p442 = pneg %p148
        $region38: #{tpu_custom_call.1} parent=35 // pred_check_branch
          %444 = sbr.rel (%p442) target = $region40
        $region39: #{tpu_custom_call.1} parent=35 // pred_region
          %s446 = ssub.s32 256, 256
          %447 = vsyncadd %s438, %s446
          %s448 = smul.addr %s22, 2
          %s449 = sadd.s32 %s23, %s448
          %s450 = smul.addr %s449, 128
          %s451 = scalar_lea.hbm %s4, %s450
          %s452 = sshll.u32 %s441, 4
          %s453 = int_to_ptr.vmem [resolvable:$true] %s452
          %458 = dma.vmem_to_hbm [thread:$0]  %s453, 256, %s451, %s438, 128, 128, 8
        $region40: #{tpu_custom_call.1} parent=35 // pred_fallthru
          _
      $region36: #{tpu_custom_call.1} parent=5 // pred_fallthru
        _
      %p459 = scmp.le.s32.totalorder 2, %s13
      // Predicated region
      $region41: #{tpu_custom_call.1} parent=5 // pred_check
        %p460 = pneg %p459
      $region42: #{tpu_custom_call.1} parent=5 // pred_check_branch
        %462 = sbr.rel (%p460) target = $region44
      $region43: #{tpu_custom_call.1} parent=5 // pred_region
        %s463 = ssub.s32 %s13, 2
        // Predicated region
        $region45: #{tpu_custom_call.1} parent=43 // pred_check
          %p464 = pneg %p154
        $region46: #{tpu_custom_call.1} parent=43 // pred_check_branch
          %466 = sbr.rel (%p464) target = $region48
        $region47: #{tpu_custom_call.1} parent=43 // pred_region
          %s467 = sand.u32 %s139, 1
          %s468 = scalar_lea.sflag [#allocation3], %s467
          %s469 = sand.u32 %s139, 1
          %s470 = smul.addr %s469, 16
          %s471 = scalar_lea.vmem [#allocation2], %s470
          %472 = dma.done %s468, 256
        $region48: #{tpu_custom_call.1} parent=43 // pred_fallthru
          _
      $region44: #{tpu_custom_call.1} parent=5 // pred_fallthru
        _
    $region6: #{tpu_custom_call.1} parent=1 // loop_footer
      %s17 = sadd.s32 1, %s13
    $region7: #{tpu_custom_call.1} parent=1 // loop_footer_branch
      %12 = sbr.rel target = $region3
    $region8: #{tpu_custom_call.1} parent=1 // loop_exit
      _
    %473 = vsyncpa [#allocation3], 1
    %s474 = scalar_lea.sflag [#allocation3], 1
    %475 = vsyncpa %s474, 1

</llo_original>
